<compile_context>
chip_gen: v6e
topology: v6e:2x2x1
jax: 0.10.0
libtpu: 0.0.40
codegen_flags: <defaults>
</compile_context>

<pallas_src>
import functools

import jax
import jax.numpy as jnp
from jax import lax
from jax.experimental import pallas as pl
from jax.experimental.pallas import tpu as pltpu

NUM_CLASSES = 19
LANE = 128
TILE_HW_DEFAULT = 32 * 1024    # v5e/v6e: (19,32768) f32 ~ 3.1 MB padded / buf
TILE_HW_V7X = 128 * 1024       # v7x: amortize per-step overhead at 3.2 TB/s

# Fixed source distribution from the PyTorch module (19 classes).
SOURCE_FENBU = jnp.array(
    [0.14250927, 0.08276533, 0.11154246, 0.02590515, 0.02759069,
     0.05180943, 0.02695177, 0.02489249, 0.12235474, 0.03795863,
     0.09590349, 0.04986444, 0.01680536, 0.06009313, 0.02781029,
     0.02729403, 0.01970997, 0.02439774, 0.02384157],
    dtype=jnp.float32,
)


def _device_kind():
    try:
        return jax.devices()[0].device_kind.lower()
    except Exception:
        return ""


def _loss_prior_partial_kernel(x_ref, out_ref, *, tile_hw, steps_per_split,
                               hw, needs_mask, acc_width, tail_full, tail_rem):
    """Accumulate per-class, per-lane-group partial sums of one (C, tile_hw) tile.

    x_ref:   (C, tile_hw)   VMEM tile of the flattened prediction.
    out_ref: (C, acc_width) per-split partial sums (output block resident
                            across the reduction axis; acts as accumulator).
    """
    i = pl.program_id(0)            # split axis (2 TensorCores on v7x)
    k = pl.program_id(1)            # reduction over spatial tiles
    c = x_ref.shape[0]
    n_chunks = tile_hw // acc_width
    global_start = (i * steps_per_split + k) * tile_hw   # element offset in HW

    @pl.when(k == 0)
    def _():
        out_ref[...] = jnp.zeros_like(out_ref)

    def _sum_chunks(n):
        # n is static.  Each step adds a (c, acc_width) slab: acc_width//128
        # independent 128-lane accumulator chains -> stays vld/HBM bound.
        if n == 0:
            return jnp.zeros((c, acc_width), jnp.float32)
        unroll = max(1, min(8, n))

        def body(j, acc):
            off = pl.multiple_of(j * acc_width, acc_width)
            return acc + x_ref[:, pl.ds(off, acc_width)].astype(jnp.float32)

        return lax.fori_loop(0, n, body,
                             jnp.zeros((c, acc_width), jnp.float32),
                             unroll=unroll)

    if not needs_mask:
        # Exact coverage: every tile is fully backed by real data.
        out_ref[...] += _sum_chunks(n_chunks)
    else:
        fully_inside = global_start + tile_hw <= hw

        @pl.when(fully_inside)
        def _():
            out_ref[...] += _sum_chunks(n_chunks)

        # Boundary tile (at most one per call): first `tail_full` chunks are
        # fully valid, then one partially valid chunk (mask hoisted, computed
        # once).  Clamped duplicate tiles (global_start >= hw) add nothing.
        @pl.when(jnp.logical_not(fully_inside) & (global_start < hw))
        def _():
            acc = _sum_chunks(tail_full)
            if tail_rem > 0:
                off = tail_full * acc_width
                chunk = x_ref[:, pl.ds(off, acc_width)].astype(jnp.float32)
                col = lax.broadcasted_iota(jnp.int32, (c, acc_width), 1)
                acc = acc + jnp.where(col < tail_rem, chunk, 0.0)
            out_ref[...] += acc


def loss_prior(predict, *, tile_hw=None, num_splits=None,
               use_core_parallel=None, input_buffers=None):
    """predict: (1, C, H, W) float -> scalar loss (float32)."""
    n, c, h, w = predict.shape
    assert n == 1 and c == NUM_CLASSES
    hw = h * w
    x = predict.reshape(c, hw)                      # glue: squeeze + view

    kind = _device_kind()
    is_v7 = "v7" in kind
    dual_core = is_v7 or ("v4" in kind) or ("v5p" in kind)
    if use_core_parallel is None:
        use_core_parallel = is_v7

    # Tile selection: biggest lane-aligned tile up to the per-device default.
    hw_pad = ((hw + LANE - 1) // LANE) * LANE
    if tile_hw is None:
        tile_hw = min(hw_pad, TILE_HW_V7X if is_v7 else TILE_HW_DEFAULT)
    assert tile_hw % LANE == 0 and tile_hw >= LANE

    nb = -(-hw // tile_hw)                          # number of real blocks
    if num_splits is None:
        # Split only buys anything on dual-TensorCore parts.
        num_splits = 2 if (dual_core and nb >= 2) else 1
    steps_per_split = -(-nb // num_splits)

    coverage = num_splits * steps_per_split * tile_hw
    needs_mask = coverage != hw
    # Guard (per review): the unmasked fast path may only run when every tile
    # is exactly filled with real data.
    assert needs_mask == (nb * tile_hw != hw or num_splits * steps_per_split != nb)

    # Accumulator width: up to 4 independent 128-lane groups per class.
    if tile_hw % (4 * LANE) == 0:
        acc_width = 4 * LANE
    elif tile_hw % (2 * LANE) == 0:
        acc_width = 2 * LANE
    else:
        acc_width = LANE

    tail_valid = hw % tile_hw                       # valid elems in boundary tile
    tail_full = tail_valid // acc_width
    tail_rem = tail_valid % acc_width

    kernel = functools.partial(
        _loss_prior_partial_kernel,
        tile_hw=tile_hw, steps_per_split=steps_per_split, hw=hw,
        needs_mask=needs_mask, acc_width=acc_width,
        tail_full=tail_full, tail_rem=tail_rem)

    # Input index map: clamp so duplicated (over-covering) blocks never DMA
    # past the array; their contribution is suppressed in-kernel.
    def x_index_map(i, k):
        return (0, jnp.minimum(i * steps_per_split + k, nb - 1))

    in_spec_kwargs = {}
    if input_buffers is not None:
        in_spec_kwargs["pipeline_mode"] = pl.Buffered(input_buffers)
    in_spec = pl.BlockSpec((c, tile_hw), x_index_map, **in_spec_kwargs)

    # VMEM budget sized from the actual (sublane-padded) buffer footprint.
    padded_c = ((c + 7) // 8) * 8
    buf_bytes = padded_c * tile_hw * x.dtype.itemsize
    vmem_limit = int(min(56 * 2**20, max(32 * 2**20, 3 * buf_bytes + 8 * 2**20)))

    cost = pl.CostEstimate(
        flops=c * hw,
        transcendentals=0,
        bytes_accessed=c * hw * x.dtype.itemsize + num_splits * c * acc_width * 4,
    )

    def run(semantics):
        return pl.pallas_call(
            kernel,
            out_shape=jax.ShapeDtypeStruct((num_splits, c, acc_width),
                                           jnp.float32),
            grid_spec=pltpu.PrefetchScalarGridSpec(
                num_scalar_prefetch=0,
                grid=(num_splits, steps_per_split),
                in_specs=[in_spec],
                out_specs=pl.BlockSpec((None, c, acc_width),
                                       lambda i, k: (i, 0, 0)),
            ),
            compiler_params=pltpu.CompilerParams(
                dimension_semantics=semantics,
                vmem_limit_bytes=vmem_limit,
            ),
            cost_estimate=cost,
        )(x)

    # Prefer CORE_PARALLEL on dual-TC parts so the split provably maps to both
    # cores; fall back to plain "parallel" if the compiler rejects it.
    semantics_options = []
    core_parallel = getattr(pltpu, "CORE_PARALLEL", None)
    arbitrary = getattr(pltpu, "ARBITRARY", "arbitrary")
    if num_splits > 1 and use_core_parallel and core_parallel is not None:
        semantics_options.append((core_parallel, arbitrary))
    if num_splits > 1:
        semantics_options.append(("parallel", "arbitrary"))
    else:
        semantics_options.append(("arbitrary", "arbitrary"))

    partials = None
    last_err = None
    for sem in semantics_options:
        try:
            partials = run(sem)
            break
        except Exception as e:          # fallback for unsupported semantics
            last_err = e
    if partials is None:
        raise last_err

    # Tiny epilogue on 19 values (nonlinear relu must come AFTER the
    # cross-split / cross-lane combine, so it lives in the wrapper).
    class_sums = partials.sum(axis=(0, 2))              # (C,)
    target_fenbu = class_sums / jnp.float32(hw)
    distance = jnp.maximum(SOURCE_FENBU - target_fenbu, 0.0)
    return distance.sum()


def loss_prior_ref(predict):
    """Pure-JAX reference mirroring the PyTorch forward."""
    c = predict.shape[1]
    hw = predict.shape[2] * predict.shape[3]
    target_fenbu = predict.reshape(c, hw).astype(jnp.float32).sum(axis=1) / hw
    distance = jnp.maximum(SOURCE_FENBU - target_fenbu, 0.0)
    return distance.sum()


if __name__ == "__main__":
    key = jax.random.PRNGKey(0)

    def check(p, **kw):
        o = jax.block_until_ready(loss_prior(p, **kw))
        r = jax.block_until_ready(loss_prior_ref(p))
        assert jnp.allclose(o, r, rtol=1e-5, atol=1e-6), (o, r)

    # 1) Basic small case (single tile, exact coverage, unmasked path).
    check(jax.random.uniform(key, (1, NUM_CLASSES, 16, 16), dtype=jnp.float32))

    # 2) Ragged spatial size (H*W not a multiple of 128) -> masked tail path
    #    with a single partially valid chunk.
    check(jax.random.uniform(jax.random.fold_in(key, 1),
                             (1, NUM_CLASSES, 24, 17), dtype=jnp.float32))

    # 3) Multi-tile reduction (even block count; 2-way core split on dual-TC).
    check(jax.random.uniform(jax.random.fold_in(key, 2),
                             (1, NUM_CLASSES, 16, 64), dtype=jnp.float32),
          tile_hw=256)

    # 4) Odd block count -> clamped duplicate trailing block (contributes 0).
    check(jax.random.uniform(jax.random.fold_in(key, 3),
                             (1, NUM_CLASSES, 16, 48), dtype=jnp.float32),
          tile_hw=256)

    # 5) Wide-accumulator (4x128) unrolled fast path, multiple chunks.
    check(jax.random.uniform(jax.random.fold_in(key, 4),
                             (1, NUM_CLASSES, 64, 160), dtype=jnp.float32))

    # 6) Tail with both full chunks and a partial chunk (hw = 667).
    check(jax.random.uniform(jax.random.fold_in(key, 5),
                             (1, NUM_CLASSES, 23, 29), dtype=jnp.float32))

    # 7) bf16 streaming input (f32 accumulation in-kernel).
    check(jax.random.uniform(jax.random.fold_in(key, 6),
                             (1, NUM_CLASSES, 32, 40)).astype(jnp.bfloat16))

    print("KERNEL_OK")
</pallas_src>

<mosaic_0001>
module attributes {stable_mosaic.version = 11 : i64} {
  func.func @_loss_prior_partial_kernel(%arg0: i32, %arg1: i32, %arg2: memref<19x256xf32, #tpu.memory_space<vmem>>, %arg3: memref<1x19x256xf32, #tpu.memory_space<vmem>>) attributes {dimension_semantics = [#tpu.dimension_semantics<arbitrary>, #tpu.dimension_semantics<arbitrary>], iteration_bounds = array<i64: 1, 1>, scalar_prefetch = 0 : i64, scratch_operands = 0 : i64, tpu.core_type = #tpu.core_type<tc>, window_params = [{transform_indices = @transform_0, window_bounds = array<i64: 19, 256>}, {transform_indices = @transform_1, window_bounds = array<i64: 1, 19, 256>}]} {
    %c0_i32 = arith.constant 0 : i32
    %0 = arith.cmpi eq, %arg1, %c0_i32 : i32
    %1 = arith.extui %0 : i1 to i32
    %c0_i32_0 = arith.constant 0 : i32
    %2 = arith.cmpi ne, %1, %c0_i32_0 : i32
    scf.if %2 {
      %cst_8 = arith.constant 0.000000e+00 : f32
      %15 = vector.broadcast %cst_8 : f32 to vector<19x256xf32>
      %c0_9 = arith.constant 0 : index
      %c0_10 = arith.constant 0 : index
      %c0_11 = arith.constant 0 : index
      %16 = vector.load %arg3[%c0_9, %c0_10, %c0_11] : memref<1x19x256xf32, #tpu.memory_space<vmem>>, vector<1x19x256xf32>
      %17 = vector.shape_cast %16 : vector<1x19x256xf32> to vector<19x256xf32>
      %18 = vector.shape_cast %15 : vector<19x256xf32> to vector<1x19x256xf32>
      tpu.vector_store %arg3[%c0_9, %c0_10, %c0_11], %18 {strides = array<i32>} : memref<1x19x256xf32, #tpu.memory_space<vmem>>, vector<1x19x256xf32>,
    } else {
    }
    %c0 = arith.constant 0 : index
    %c0_1 = arith.constant 0 : index
    %c0_2 = arith.constant 0 : index
    %3 = vector.load %arg3[%c0, %c0_1, %c0_2] : memref<1x19x256xf32, #tpu.memory_space<vmem>>, vector<1x19x256xf32>
    %4 = vector.shape_cast %3 : vector<1x19x256xf32> to vector<19x256xf32>
    %cst = arith.constant 0.000000e+00 : f32
    %5 = vector.broadcast %cst : f32 to vector<19x256xf32>
    %c0_i32_3 = arith.constant 0 : i32
    %c256_i32 = arith.constant 256 : i32
    %6 = arith.muli %c0_i32_3, %c256_i32 : i32
    %7 = tpu.assume_multiple %6, 256 : i32
    %c0_4 = arith.constant 0 : index
    %8 = arith.index_cast %7 : i32 to index
    %9 = vector.load %arg2[%c0_4, %8] : memref<19x256xf32, #tpu.memory_space<vmem>>, vector<19x256xf32>
    %10 = arith.addf %5, %9 : vector<19x256xf32>
    %c1_i32 = arith.constant 1 : i32
    %11 = arith.addf %4, %10 : vector<19x256xf32>
    %c0_5 = arith.constant 0 : index
    %c0_6 = arith.constant 0 : index
    %c0_7 = arith.constant 0 : index
    %12 = vector.load %arg3[%c0_5, %c0_6, %c0_7] : memref<1x19x256xf32, #tpu.memory_space<vmem>>, vector<1x19x256xf32>
    %13 = vector.shape_cast %12 : vector<1x19x256xf32> to vector<19x256xf32>
    %14 = vector.shape_cast %11 : vector<19x256xf32> to vector<1x19x256xf32>
    tpu.vector_store %arg3[%c0_5, %c0_6, %c0_7], %14 {strides = array<i32>} : memref<1x19x256xf32, #tpu.memory_space<vmem>>, vector<1x19x256xf32>,
    return
  }
  func.func @transform_0(%arg0: i32, %arg1: i32) -> (i32, i32) {
    %c1_i32 = arith.constant 1 : i32
    %0 = arith.muli %arg0, %c1_i32 : i32
    %1 = arith.addi %0, %arg1 : i32
    %c0_i32 = arith.constant 0 : i32
    %2 = arith.minsi %1, %c0_i32 : i32
    %c0_i32_0 = arith.constant 0 : i32
    %c0_i32_1 = arith.constant 0 : i32
    return %c0_i32_0, %2 : i32, i32
  }
  func.func @transform_1(%arg0: i32, %arg1: i32) -> (i32, i32, i32) {
    %c0_i32 = arith.constant 0 : i32
    %c0_i32_0 = arith.constant 0 : i32
    %c0_i32_1 = arith.constant 0 : i32
    return %arg0, %c0_i32, %c0_i32_0 : i32, i32, i32
  }
}

</mosaic_0001>

<llo_original>
// kernel: tpu_custom_call.1
$region0: #{tpu_custom_call.1}
  #allocation0 [shape = 'u32[]', space=smem, size = 0x4, offset = 0x4, fixed_abs, tag = 'smem constant byte address 0x4 - core index']
  #allocation1 [shape = 'u32[144,128]{1,0:T(1,128)}', space=vmem, size = 0x12000, scoped, tag = 'internal scratch']
  %s0 = inlined_call_operand.hbm [shape: f32[19,256], index: 0, kind: input, shape index: {}]
  %s1 = inlined_call_operand.vmem [shape: f32[1,19,256], index: 1, kind: output, shape index: {}]
  %s2 = sld [smem:[#allocation0]]
  $region22: #{tpu_custom_call.1} parent=0
    _
  %s4 = ssub.s32 1, %s2
  %s5 = scalar_select 0, %s4, %s2
  $region1: #{tpu_custom_call.1} parent=0
    #allocation2 [shape = 'u8[24576]{0}', space=vmem, size = 0x6000, scoped, tag = 'input window, operand 0, single buffered']
    #allocation3 [shape = 's32[1]{0}', space=sflag, size = 0x4, scoped, tag = 'scoped memory for tpu_custom_call.1']
    %6 = vsyncpa [#allocation3], 0
    // Predicated region
    $region2: #{tpu_custom_call.1} parent=1 // pred_check
      _
    $region3: #{tpu_custom_call.1} parent=1 // pred_check_branch
      %8 = sbr.rel (0) target = $region5
    $region4: #{tpu_custom_call.1} parent=1 // pred_region
      %s9 = sadd.s32 0, 0
      %p10 = scmp.lt.s32.totalorder %s9, 0
      %s11 = scalar_select %p10, %s9, 0
      %s12 = smul.u32 2, %s11
      %s14 = ssub.s32 768, 768
      %15 = vsyncadd [#allocation3], %s14
      %s16 = smul.addr %s12, 128
      %s17 = scalar_lea.hbm %s0, %s16
      %s18 = sshll.u32 [#allocation2], 4
      %s19 = int_to_ptr.vmem [resolvable:$true] %s18
      %24 = dma.hbm_to_vmem [thread:$0]  %s17, 768, %s19, [#allocation3], 256, 256, 16
    $region5: #{tpu_custom_call.1} parent=1 // pred_fallthru
      _
    // Predicated region
    $region6: #{tpu_custom_call.1} parent=1 // pred_check
      _
    $region7: #{tpu_custom_call.1} parent=1 // pred_check_branch
      %26 = sbr.rel (0) target = $region9
    $region8: #{tpu_custom_call.1} parent=1 // pred_region
      %27 = dma.done [#allocation3], 768
    $region9: #{tpu_custom_call.1} parent=1 // pred_fallthru
      _
    %s28 = sadd.s32 0, 0
    %p29 = scmp.lt.s32.totalorder %s28, 0
    %s30 = scalar_select %p29, %s28, 0
    %s31 = smul.u32 2, %s30
    %p32 = scmp.eq.s32.totalorder 0, 0
    // Predicated region
    $region10: #{tpu_custom_call.1} parent=1 // pred_check
      %p33 = pneg %p32
    $region11: #{tpu_custom_call.1} parent=1 // pred_check_branch
      %35 = sbr.rel (%p33) target = $region13
    $region12: #{tpu_custom_call.1} parent=1 // pred_region
      %36 = vst [vmem:[%s1] sm:$0xff] 0.0
      %37 = vst [vmem:[%s1 + $0x8] sm:$0xff] 0.0
      %38 = vst [vmem:[%s1 + $0x10] sm:$0xff] 0.0
      %39 = vst [vmem:[%s1 + $0x18] sm:$0xff] 0.0
      %40 = vst [vmem:[%s1 + $0x20] sm:$0x7] 0.0
      %41 = vst [vmem:[%s1 + $0x28] sm:$0x7] 0.0
    $region13: #{tpu_custom_call.1} parent=1 // pred_fallthru
      _
    %v42 = vld [vmem:[%s1] sm:$0xff]
    %v43 = vld [vmem:[%s1 + $0x8] sm:$0xff]
    %v44 = vld [vmem:[%s1 + $0x10] sm:$0xff]
    %v45 = vld [vmem:[%s1 + $0x18] sm:$0xff]
    %v46 = vld [vmem:[%s1 + $0x20] sm:$0x7]
    %v47 = vld [vmem:[%s1 + $0x28] sm:$0x7]
    %v48 = vld [vmem:[#allocation2] sm:$0xff]
    %v49 = vld [vmem:[#allocation2 + $0x8] sm:$0xff]
    %v50 = vld [vmem:[#allocation2 + $0x10] sm:$0xff]
    %v51 = vld [vmem:[#allocation2 + $0x18] sm:$0xff]
    %v52 = vld [vmem:[#allocation2 + $0x20] sm:$0x7]
    %v53 = vld [vmem:[#allocation2 + $0x28] sm:$0x7]
    %v54 = vadd.f32 %v48, 0.0
    %v55 = vadd.f32 %v49, 0.0
    %v56 = vadd.f32 %v50, 0.0
    %v57 = vadd.f32 %v51, 0.0
    %v58 = vadd.f32 %v52, 0.0
    %v59 = vadd.f32 %v53, 0.0
    %v60 = vadd.f32 %v42, %v54
    %v61 = vadd.f32 %v43, %v55
    %v62 = vadd.f32 %v44, %v56
    %v63 = vadd.f32 %v45, %v57
    %v64 = vadd.f32 %v46, %v58
    %v65 = vadd.f32 %v47, %v59
    %66 = vst [vmem:[%s1] sm:$0xff] %v60
    %67 = vst [vmem:[%s1 + $0x8] sm:$0xff] %v61
    %68 = vst [vmem:[%s1 + $0x10] sm:$0xff] %v62
    %69 = vst [vmem:[%s1 + $0x18] sm:$0xff] %v63
    %70 = vst [vmem:[%s1 + $0x20] sm:$0x7] %v64
    %71 = vst [vmem:[%s1 + $0x28] sm:$0x7] %v65
    // Predicated region
    $region14: #{tpu_custom_call.1} parent=1 // pred_check
      _
    $region15: #{tpu_custom_call.1} parent=1 // pred_check_branch
      %73 = sbr.rel (0) target = $region17
    $region16: #{tpu_custom_call.1} parent=1 // pred_region
      _
    $region17: #{tpu_custom_call.1} parent=1 // pred_fallthru
      _
    // Predicated region
    $region18: #{tpu_custom_call.1} parent=1 // pred_check
      _
    $region19: #{tpu_custom_call.1} parent=1 // pred_check_branch
      %75 = sbr.rel (0) target = $region21
    $region20: #{tpu_custom_call.1} parent=1 // pred_region
      _
    $region21: #{tpu_custom_call.1} parent=1 // pred_fallthru
      _
    %76 = vsyncpa [#allocation3], 1

</llo_original>
